<compile_context>
chip_gen: v7x
topology: tpu7x:2x2x1
jax: 0.10.0
libtpu: 0.0.40
codegen_flags: <defaults>
</compile_context>

<pallas_src>
import functools

import jax
import jax.numpy as jnp
from jax.experimental import pallas as pl
from jax.experimental.pallas import tpu as pltpu


# ------------------------------ in-kernel math --------------------------------
def _erf(z):
    # Abramowitz & Stegun 7.1.26 rational approximation, |err| < 1.5e-7.
    # (avoids relying on an erf lowering inside Mosaic; only exp / recip / select)
    az = jnp.abs(z)
    # EUP reciprocal; approx=False preserves the erf-approximation error budget so the
    # result still matches jax.nn.gelu(approximate=False) to ~1e-7.
    t = pl.reciprocal(1.0 + 0.3275911 * az)
    poly = ((((1.061405429 * t - 1.453152027) * t + 1.421413741) * t
             - 0.284496736) * t + 0.254829592) * t
    e = 1.0 - poly * jnp.exp(-az * az)
    return jnp.where(z >= 0.0, e, -e)


def _gelu_exact(x):
    # matches torch.nn.GELU() (erf formulation) to ~1e-7
    return 0.5 * x * (1.0 + _erf(x * 0.7071067811865476))


# ------------------------------- Pallas kernel --------------------------------
def _inner_patch_embed_kernel(params_ref,   # VMEM (11, mult, C, 1): [w0..w8 | bn scale | bn shift]
                              taps_ref,     # VMEM (9, C, TILE_N) im2col taps (lane-dense)
                              o_ref,        # VMEM (mult, C, TILE_N)
                              *, mult):
    # Depthwise 3x3 conv as 9 full-sublane FMAs per multiplier: (C,1) weight columns
    # lane-broadcast against (C, TILE_N) tap tiles (pure VPU; MXU not needed here).
    for j in range(mult):
        acc = params_ref[0, j] * taps_ref[0].astype(jnp.float32)
        for k in range(1, 9):
            acc = acc + params_ref[k, j] * taps_ref[k].astype(jnp.float32)
        # fused conv-bias + BatchNorm(eval): y = conv * scale + shift
        y = acc * params_ref[9, j] + params_ref[10, j]
        o_ref[j] = _gelu_exact(y).astype(o_ref.dtype)   # direct (C, TILE_N) store


# --------------------------------- Wrapper -------------------------------------
def _pick_lane_tile(n_total, c, mult, taps_itemsize, out_itemsize,
                    budget_bytes=24 << 20):
    """Largest 128-multiple lane tile (<=2048) dividing n_total whose double-buffered
    taps+out footprint fits a v7x-safe scoped-VMEM budget."""
    cands = [t for t in (2048, 1024, 512, 256, 128) if n_total % t == 0]
    if not cands:
        return n_total                                     # full-array lane block
    for t in cands:
        fp = 2 * t * c * (9 * taps_itemsize + mult * out_itemsize)
        if fp <= budget_bytes:
            return t
    return cands[-1]


def inner_patch_embed(x, H, W, params, *, down_sample, bn_eps=1e-5,
                      taps_dtype=jnp.float32):
    """x: (B, H*W, C) float32.  Returns (B, Ho*Wo, E) float32 (or x if not down_sample).

    taps_dtype=jnp.bfloat16 halves the dominant HBM traffic on v6e/v7x (math stays f32
    in-kernel); keep float32 on v5e (no bf16 VPU) or when strict parity is required.
    """
    if not down_sample:
        return x

    B, N, C = x.shape
    assert N == H * W
    conv_w = params["conv_w"]                 # (E, 1, 3, 3) torch layout, groups=C
    E = conv_w.shape[0]
    assert E % C == 0
    mult = E // C
    Ho = (H + 2 - 3) // 2 + 1
    Wo = (W + 2 - 3) // 2 + 1
    n_total = B * Ho * Wo

    # ---- wrapper-side layout prep: single transpose of the UN-inflated image, then the
    #      stride-2 tap gather writes straight into the final (9, C, B*Ho*Wo) layout ----
    xpt = jnp.transpose(x.reshape(B, H, W, C), (3, 0, 1, 2))            # (C, B, H, W)
    xp = jnp.pad(xpt, ((0, 0), (0, 0), (1, 1), (1, 1)))                 # conv padding = 1
    taps = jnp.stack(
        [xp[:, :, ky:ky + 2 * Ho:2, kx:kx + 2 * Wo:2]
         for ky in range(3) for kx in range(3)], axis=0)                # (9, C, B, Ho, Wo)
    taps2 = taps.reshape(9, C, n_total).astype(taps_dtype)              # lane-dense

    # Fold conv bias + BatchNorm(eval) into one per-channel affine, then regroup the
    # channel axis E = (C, mult) as (mult, C) so every multiplier j is a full (C,.) tile.
    w9 = conv_w.reshape(E, 9).astype(jnp.float32)
    scale = params["bn_gamma"] / jnp.sqrt(params["bn_var"] + bn_eps)              # (E,)
    shift = params["bn_beta"] + (params["conv_b"] - params["bn_mean"]) * scale    # (E,)
    w_kjc = jnp.transpose(w9.reshape(C, mult, 9), (2, 1, 0))            # (9, mult, C)
    sc_jc = scale.reshape(C, mult).T[None]                              # (1, mult, C)
    sh_jc = shift.reshape(C, mult).T[None]                              # (1, mult, C)
    packed = jnp.concatenate([w_kjc, sc_jc, sh_jc], axis=0)[..., None]  # (11, mult, C, 1)
    packed = packed.astype(jnp.float32)

    taps_isz = jnp.dtype(taps_dtype).itemsize
    tile_n = _pick_lane_tile(n_total, C, mult, taps_isz, 4)
    grid = (n_total // tile_n,)
    # double-buffered taps+out tiles + resident params + headroom (<= 32 MiB by
    # construction of tile_n, so it also fits v7x's tighter VMEM).
    vmem_bytes = int(2 * tile_n * C * (9 * taps_isz + mult * 4)
                     + packed.size * 4 + (2 << 20))
    vmem_bytes = max(vmem_bytes, 4 << 20)

    kernel = functools.partial(_inner_patch_embed_kernel, mult=mult)
    out3 = pl.pallas_call(
        kernel,
        out_shape=jax.ShapeDtypeStruct((mult, C, n_total), jnp.float32),
        grid=grid,
        in_specs=[
            pl.BlockSpec((11, mult, C, 1), lambda i: (0, 0, 0, 0)),   # resident params
            pl.BlockSpec((9, C, tile_n), lambda i: (0, 0, i)),        # streamed taps
        ],
        out_specs=pl.BlockSpec((mult, C, tile_n), lambda i: (0, 0, i)),
        compiler_params=pltpu.CompilerParams(
            dimension_semantics=("parallel",),
            vmem_limit_bytes=vmem_bytes),
    )(packed, taps2)

    # (mult, C, B*Ho*Wo) -> (B, Ho*Wo, E) with E flattened as ci*mult + j (torch channel
    # order); == x.flatten(2).transpose(1, 2) in the PyTorch module.
    return jnp.transpose(out3.reshape(mult, C, B, Ho * Wo),
                         (2, 3, 1, 0)).reshape(B, Ho * Wo, E)


# ----------------------------- Pure-JAX reference -------------------------------
def inner_patch_embed_ref(x, H, W, params, *, down_sample, bn_eps=1e-5):
    if not down_sample:
        return x
    B, N, C = x.shape
    ximg = jnp.transpose(x.reshape(B, H, W, C), (0, 3, 1, 2))
    y = jax.lax.conv_general_dilated(
        ximg, params["conv_w"], window_strides=(2, 2), padding=((1, 1), (1, 1)),
        dimension_numbers=("NCHW", "OIHW", "NCHW"), feature_group_count=C)
    y = y + params["conv_b"][None, :, None, None]
    inv = jax.lax.rsqrt(params["bn_var"] + bn_eps)
    y = ((y - params["bn_mean"][None, :, None, None])
         * (params["bn_gamma"] * inv)[None, :, None, None]
         + params["bn_beta"][None, :, None, None])
    y = jax.nn.gelu(y, approximate=False)     # exact erf GELU == torch.nn.GELU()
    E = y.shape[1]
    return jnp.transpose(y.reshape(B, E, -1), (0, 2, 1))


# ------------------------------------ Main --------------------------------------
if __name__ == "__main__":
    # InnerPatchEmbed(input_dim=4, embed_dim=8, down_sample=True); B=2, H=W=16
    B, C, E, H, W = 2, 4, 8, 16, 16

    key = jax.random.PRNGKey(0)
    ks = jax.random.split(key, 7)
    x = jax.random.normal(ks[0], (B, H * W, C), jnp.float32)
    params = dict(
        conv_w=0.3 * jax.random.normal(ks[1], (E, 1, 3, 3), jnp.float32),
        conv_b=0.1 * jax.random.normal(ks[2], (E,), jnp.float32),
        bn_gamma=jax.random.uniform(ks[3], (E,), jnp.float32, 0.5, 1.5),
        bn_beta=0.1 * jax.random.normal(ks[4], (E,), jnp.float32),
        bn_mean=0.1 * jax.random.normal(ks[5], (E,), jnp.float32),
        bn_var=jax.random.uniform(ks[6], (E,), jnp.float32, 0.5, 1.5),
    )

    out = inner_patch_embed(x, H, W, params, down_sample=True)
    out = jax.block_until_ready(out)

    ref = inner_patch_embed_ref(x, H, W, params, down_sample=True)
    assert out.shape == (B, (H // 2) * (W // 2), E)
    assert jnp.allclose(out, ref, atol=1e-4, rtol=1e-4), "mismatch vs JAX reference"

    # down_sample=False path is the identity, as in the PyTorch module
    assert jnp.allclose(inner_patch_embed(x, H, W, params, down_sample=False), x)

    print("KERNEL_OK")
</pallas_src>

<mosaic_0001>
module attributes {stable_mosaic.version = 11 : i64} {
  func.func @_inner_patch_embed_kernel(%arg0: i32, %arg1: memref<11x2x4x1xf32, #tpu.memory_space<vmem>>, %arg2: memref<9x4x128xf32, #tpu.memory_space<vmem>>, %arg3: memref<2x4x128xf32, #tpu.memory_space<vmem>>) attributes {dimension_semantics = [#tpu.dimension_semantics<parallel>], iteration_bounds = array<i64: 1>, scalar_prefetch = 0 : i64, scratch_operands = 0 : i64, tpu.core_type = #tpu.core_type<tc>, window_params = [{pipeline_mode = #tpu.pipeline_mode<synchronous>, transform_indices = @transform_0, window_bounds = array<i64: 11, 2, 4, 1>}, {transform_indices = @transform_1, window_bounds = array<i64: 9, 4, 128>}, {transform_indices = @transform_2, window_bounds = array<i64: 2, 4, 128>}]} {
    %c0 = arith.constant 0 : index
    %c0_0 = arith.constant 0 : index
    %c0_1 = arith.constant 0 : index
    %c0_2 = arith.constant 0 : index
    %0 = vector.load %arg1[%c0, %c0_0, %c0_1, %c0_2] : memref<11x2x4x1xf32, #tpu.memory_space<vmem>>, vector<1x1x4x1xf32>
    %1 = vector.shape_cast %0 : vector<1x1x4x1xf32> to vector<4x1xf32>
    %c0_3 = arith.constant 0 : index
    %c0_4 = arith.constant 0 : index
    %c0_5 = arith.constant 0 : index
    %2 = vector.load %arg2[%c0_3, %c0_4, %c0_5] : memref<9x4x128xf32, #tpu.memory_space<vmem>>, vector<1x4x128xf32>
    %3 = vector.shape_cast %2 : vector<1x4x128xf32> to vector<4x128xf32>
    %4 = vector.broadcast %1 : vector<4x1xf32> to vector<4x128xf32>
    %5 = arith.mulf %4, %3 : vector<4x128xf32>
    %c1 = arith.constant 1 : index
    %c0_6 = arith.constant 0 : index
    %c0_7 = arith.constant 0 : index
    %c0_8 = arith.constant 0 : index
    %6 = vector.load %arg1[%c1, %c0_6, %c0_7, %c0_8] : memref<11x2x4x1xf32, #tpu.memory_space<vmem>>, vector<1x1x4x1xf32>
    %7 = vector.shape_cast %6 : vector<1x1x4x1xf32> to vector<4x1xf32>
    %c1_9 = arith.constant 1 : index
    %c0_10 = arith.constant 0 : index
    %c0_11 = arith.constant 0 : index
    %8 = vector.load %arg2[%c1_9, %c0_10, %c0_11] : memref<9x4x128xf32, #tpu.memory_space<vmem>>, vector<1x4x128xf32>
    %9 = vector.shape_cast %8 : vector<1x4x128xf32> to vector<4x128xf32>
    %10 = vector.broadcast %7 : vector<4x1xf32> to vector<4x128xf32>
    %11 = arith.mulf %10, %9 : vector<4x128xf32>
    %12 = arith.addf %5, %11 : vector<4x128xf32>
    %c2 = arith.constant 2 : index
    %c0_12 = arith.constant 0 : index
    %c0_13 = arith.constant 0 : index
    %c0_14 = arith.constant 0 : index
    %13 = vector.load %arg1[%c2, %c0_12, %c0_13, %c0_14] : memref<11x2x4x1xf32, #tpu.memory_space<vmem>>, vector<1x1x4x1xf32>
    %14 = vector.shape_cast %13 : vector<1x1x4x1xf32> to vector<4x1xf32>
    %c2_15 = arith.constant 2 : index
    %c0_16 = arith.constant 0 : index
    %c0_17 = arith.constant 0 : index
    %15 = vector.load %arg2[%c2_15, %c0_16, %c0_17] : memref<9x4x128xf32, #tpu.memory_space<vmem>>, vector<1x4x128xf32>
    %16 = vector.shape_cast %15 : vector<1x4x128xf32> to vector<4x128xf32>
    %17 = vector.broadcast %14 : vector<4x1xf32> to vector<4x128xf32>
    %18 = arith.mulf %17, %16 : vector<4x128xf32>
    %19 = arith.addf %12, %18 : vector<4x128xf32>
    %c3 = arith.constant 3 : index
    %c0_18 = arith.constant 0 : index
    %c0_19 = arith.constant 0 : index
    %c0_20 = arith.constant 0 : index
    %20 = vector.load %arg1[%c3, %c0_18, %c0_19, %c0_20] : memref<11x2x4x1xf32, #tpu.memory_space<vmem>>, vector<1x1x4x1xf32>
    %21 = vector.shape_cast %20 : vector<1x1x4x1xf32> to vector<4x1xf32>
    %c3_21 = arith.constant 3 : index
    %c0_22 = arith.constant 0 : index
    %c0_23 = arith.constant 0 : index
    %22 = vector.load %arg2[%c3_21, %c0_22, %c0_23] : memref<9x4x128xf32, #tpu.memory_space<vmem>>, vector<1x4x128xf32>
    %23 = vector.shape_cast %22 : vector<1x4x128xf32> to vector<4x128xf32>
    %24 = vector.broadcast %21 : vector<4x1xf32> to vector<4x128xf32>
    %25 = arith.mulf %24, %23 : vector<4x128xf32>
    %26 = arith.addf %19, %25 : vector<4x128xf32>
    %c4 = arith.constant 4 : index
    %c0_24 = arith.constant 0 : index
    %c0_25 = arith.constant 0 : index
    %c0_26 = arith.constant 0 : index
    %27 = vector.load %arg1[%c4, %c0_24, %c0_25, %c0_26] : memref<11x2x4x1xf32, #tpu.memory_space<vmem>>, vector<1x1x4x1xf32>
    %28 = vector.shape_cast %27 : vector<1x1x4x1xf32> to vector<4x1xf32>
    %c4_27 = arith.constant 4 : index
    %c0_28 = arith.constant 0 : index
    %c0_29 = arith.constant 0 : index
    %29 = vector.load %arg2[%c4_27, %c0_28, %c0_29] : memref<9x4x128xf32, #tpu.memory_space<vmem>>, vector<1x4x128xf32>
    %30 = vector.shape_cast %29 : vector<1x4x128xf32> to vector<4x128xf32>
    %31 = vector.broadcast %28 : vector<4x1xf32> to vector<4x128xf32>
    %32 = arith.mulf %31, %30 : vector<4x128xf32>
    %33 = arith.addf %26, %32 : vector<4x128xf32>
    %c5 = arith.constant 5 : index
    %c0_30 = arith.constant 0 : index
    %c0_31 = arith.constant 0 : index
    %c0_32 = arith.constant 0 : index
    %34 = vector.load %arg1[%c5, %c0_30, %c0_31, %c0_32] : memref<11x2x4x1xf32, #tpu.memory_space<vmem>>, vector<1x1x4x1xf32>
    %35 = vector.shape_cast %34 : vector<1x1x4x1xf32> to vector<4x1xf32>
    %c5_33 = arith.constant 5 : index
    %c0_34 = arith.constant 0 : index
    %c0_35 = arith.constant 0 : index
    %36 = vector.load %arg2[%c5_33, %c0_34, %c0_35] : memref<9x4x128xf32, #tpu.memory_space<vmem>>, vector<1x4x128xf32>
    %37 = vector.shape_cast %36 : vector<1x4x128xf32> to vector<4x128xf32>
    %38 = vector.broadcast %35 : vector<4x1xf32> to vector<4x128xf32>
    %39 = arith.mulf %38, %37 : vector<4x128xf32>
    %40 = arith.addf %33, %39 : vector<4x128xf32>
    %c6 = arith.constant 6 : index
    %c0_36 = arith.constant 0 : index
    %c0_37 = arith.constant 0 : index
    %c0_38 = arith.constant 0 : index
    %41 = vector.load %arg1[%c6, %c0_36, %c0_37, %c0_38] : memref<11x2x4x1xf32, #tpu.memory_space<vmem>>, vector<1x1x4x1xf32>
    %42 = vector.shape_cast %41 : vector<1x1x4x1xf32> to vector<4x1xf32>
    %c6_39 = arith.constant 6 : index
    %c0_40 = arith.constant 0 : index
    %c0_41 = arith.constant 0 : index
    %43 = vector.load %arg2[%c6_39, %c0_40, %c0_41] : memref<9x4x128xf32, #tpu.memory_space<vmem>>, vector<1x4x128xf32>
    %44 = vector.shape_cast %43 : vector<1x4x128xf32> to vector<4x128xf32>
    %45 = vector.broadcast %42 : vector<4x1xf32> to vector<4x128xf32>
    %46 = arith.mulf %45, %44 : vector<4x128xf32>
    %47 = arith.addf %40, %46 : vector<4x128xf32>
    %c7 = arith.constant 7 : index
    %c0_42 = arith.constant 0 : index
    %c0_43 = arith.constant 0 : index
    %c0_44 = arith.constant 0 : index
    %48 = vector.load %arg1[%c7, %c0_42, %c0_43, %c0_44] : memref<11x2x4x1xf32, #tpu.memory_space<vmem>>, vector<1x1x4x1xf32>
    %49 = vector.shape_cast %48 : vector<1x1x4x1xf32> to vector<4x1xf32>
    %c7_45 = arith.constant 7 : index
    %c0_46 = arith.constant 0 : index
    %c0_47 = arith.constant 0 : index
    %50 = vector.load %arg2[%c7_45, %c0_46, %c0_47] : memref<9x4x128xf32, #tpu.memory_space<vmem>>, vector<1x4x128xf32>
    %51 = vector.shape_cast %50 : vector<1x4x128xf32> to vector<4x128xf32>
    %52 = vector.broadcast %49 : vector<4x1xf32> to vector<4x128xf32>
    %53 = arith.mulf %52, %51 : vector<4x128xf32>
    %54 = arith.addf %47, %53 : vector<4x128xf32>
    %c8 = arith.constant 8 : index
    %c0_48 = arith.constant 0 : index
    %c0_49 = arith.constant 0 : index
    %c0_50 = arith.constant 0 : index
    %55 = vector.load %arg1[%c8, %c0_48, %c0_49, %c0_50] : memref<11x2x4x1xf32, #tpu.memory_space<vmem>>, vector<1x1x4x1xf32>
    %56 = vector.shape_cast %55 : vector<1x1x4x1xf32> to vector<4x1xf32>
    %c8_51 = arith.constant 8 : index
    %c0_52 = arith.constant 0 : index
    %c0_53 = arith.constant 0 : index
    %57 = vector.load %arg2[%c8_51, %c0_52, %c0_53] : memref<9x4x128xf32, #tpu.memory_space<vmem>>, vector<1x4x128xf32>
    %58 = vector.shape_cast %57 : vector<1x4x128xf32> to vector<4x128xf32>
    %59 = vector.broadcast %56 : vector<4x1xf32> to vector<4x128xf32>
    %60 = arith.mulf %59, %58 : vector<4x128xf32>
    %61 = arith.addf %54, %60 : vector<4x128xf32>
    %c9 = arith.constant 9 : index
    %c0_54 = arith.constant 0 : index
    %c0_55 = arith.constant 0 : index
    %c0_56 = arith.constant 0 : index
    %62 = vector.load %arg1[%c9, %c0_54, %c0_55, %c0_56] : memref<11x2x4x1xf32, #tpu.memory_space<vmem>>, vector<1x1x4x1xf32>
    %63 = vector.shape_cast %62 : vector<1x1x4x1xf32> to vector<4x1xf32>
    %64 = vector.broadcast %63 : vector<4x1xf32> to vector<4x128xf32>
    %65 = arith.mulf %61, %64 : vector<4x128xf32>
    %c10 = arith.constant 10 : index
    %c0_57 = arith.constant 0 : index
    %c0_58 = arith.constant 0 : index
    %c0_59 = arith.constant 0 : index
    %66 = vector.load %arg1[%c10, %c0_57, %c0_58, %c0_59] : memref<11x2x4x1xf32, #tpu.memory_space<vmem>>, vector<1x1x4x1xf32>
    %67 = vector.shape_cast %66 : vector<1x1x4x1xf32> to vector<4x1xf32>
    %68 = vector.broadcast %67 : vector<4x1xf32> to vector<4x128xf32>
    %69 = arith.addf %65, %68 : vector<4x128xf32>
    %cst = arith.constant 5.000000e-01 : f32
    %70 = vector.broadcast %cst : f32 to vector<4x128xf32>
    %71 = arith.mulf %70, %69 : vector<4x128xf32>
    %cst_60 = arith.constant 0.707106769 : f32
    %72 = vector.broadcast %cst_60 : f32 to vector<4x128xf32>
    %73 = arith.mulf %69, %72 : vector<4x128xf32>
    %74 = math.absf %73 : vector<4x128xf32>
    %cst_61 = arith.constant 0.327591091 : f32
    %75 = vector.broadcast %cst_61 : f32 to vector<4x128xf32>
    %76 = arith.mulf %75, %74 : vector<4x128xf32>
    %cst_62 = arith.constant 1.000000e+00 : f32
    %77 = vector.broadcast %cst_62 : f32 to vector<4x128xf32>
    %78 = arith.addf %77, %76 : vector<4x128xf32>
    %79 = tpu.reciprocal %78 : vector<4x128xf32> -> vector<4x128xf32>
    %cst_63 = arith.constant 1.06140542 : f32
    %80 = vector.broadcast %cst_63 : f32 to vector<4x128xf32>
    %81 = arith.mulf %80, %79 : vector<4x128xf32>
    %cst_64 = arith.constant 1.45315206 : f32
    %82 = vector.broadcast %cst_64 : f32 to vector<4x128xf32>
    %83 = arith.subf %81, %82 : vector<4x128xf32>
    %84 = arith.mulf %83, %79 : vector<4x128xf32>
    %cst_65 = arith.constant 1.42141378 : f32
    %85 = vector.broadcast %cst_65 : f32 to vector<4x128xf32>
    %86 = arith.addf %84, %85 : vector<4x128xf32>
    %87 = arith.mulf %86, %79 : vector<4x128xf32>
    %cst_66 = arith.constant 0.284496725 : f32
    %88 = vector.broadcast %cst_66 : f32 to vector<4x128xf32>
    %89 = arith.subf %87, %88 : vector<4x128xf32>
    %90 = arith.mulf %89, %79 : vector<4x128xf32>
    %cst_67 = arith.constant 0.254829586 : f32
    %91 = vector.broadcast %cst_67 : f32 to vector<4x128xf32>
    %92 = arith.addf %90, %91 : vector<4x128xf32>
    %93 = arith.mulf %92, %79 : vector<4x128xf32>
    %cst_68 = arith.constant 0.000000e+00 : f32
    %94 = vector.broadcast %cst_68 : f32 to vector<4x128xf32>
    %95 = arith.subf %94, %74 : vector<4x128xf32>
    %96 = arith.mulf %95, %74 : vector<4x128xf32>
    %97 = math.exp %96 : vector<4x128xf32>
    %98 = arith.mulf %93, %97 : vector<4x128xf32>
    %cst_69 = arith.constant 1.000000e+00 : f32
    %99 = vector.broadcast %cst_69 : f32 to vector<4x128xf32>
    %100 = arith.subf %99, %98 : vector<4x128xf32>
    %cst_70 = arith.constant 0.000000e+00 : f32
    %101 = vector.broadcast %cst_70 : f32 to vector<4x128xf32>
    %102 = arith.cmpf oge, %73, %101 : vector<4x128xf32>
    %cst_71 = arith.constant 0.000000e+00 : f32
    %103 = vector.broadcast %cst_71 : f32 to vector<4x128xf32>
    %104 = arith.subf %103, %100 : vector<4x128xf32>
    %105 = arith.select %102, %100, %104 : vector<4x128xi1>, vector<4x128xf32>
    %cst_72 = arith.constant 1.000000e+00 : f32
    %106 = vector.broadcast %cst_72 : f32 to vector<4x128xf32>
    %107 = arith.addf %106, %105 : vector<4x128xf32>
    %108 = arith.mulf %71, %107 : vector<4x128xf32>
    %c0_73 = arith.constant 0 : index
    %c0_74 = arith.constant 0 : index
    %c0_75 = arith.constant 0 : index
    %109 = vector.load %arg3[%c0_73, %c0_74, %c0_75] : memref<2x4x128xf32, #tpu.memory_space<vmem>>, vector<1x4x128xf32>
    %110 = vector.shape_cast %109 : vector<1x4x128xf32> to vector<4x128xf32>
    %111 = vector.shape_cast %108 : vector<4x128xf32> to vector<1x4x128xf32>
    tpu.vector_store %arg3[%c0_73, %c0_74, %c0_75], %111 {strides = array<i32>} : memref<2x4x128xf32, #tpu.memory_space<vmem>>, vector<1x4x128xf32>,
    %c0_76 = arith.constant 0 : index
    %c1_77 = arith.constant 1 : index
    %c0_78 = arith.constant 0 : index
    %c0_79 = arith.constant 0 : index
    %112 = vector.load %arg1[%c0_76, %c1_77, %c0_78, %c0_79] : memref<11x2x4x1xf32, #tpu.memory_space<vmem>>, vector<1x1x4x1xf32>
    %113 = vector.shape_cast %112 : vector<1x1x4x1xf32> to vector<4x1xf32>
    %c0_80 = arith.constant 0 : index
    %c0_81 = arith.constant 0 : index
    %c0_82 = arith.constant 0 : index
    %114 = vector.load %arg2[%c0_80, %c0_81, %c0_82] : memref<9x4x128xf32, #tpu.memory_space<vmem>>, vector<1x4x128xf32>
    %115 = vector.shape_cast %114 : vector<1x4x128xf32> to vector<4x128xf32>
    %116 = vector.broadcast %113 : vector<4x1xf32> to vector<4x128xf32>
    %117 = arith.mulf %116, %115 : vector<4x128xf32>
    %c1_83 = arith.constant 1 : index
    %c1_84 = arith.constant 1 : index
    %c0_85 = arith.constant 0 : index
    %c0_86 = arith.constant 0 : index
    %118 = vector.load %arg1[%c1_83, %c1_84, %c0_85, %c0_86] : memref<11x2x4x1xf32, #tpu.memory_space<vmem>>, vector<1x1x4x1xf32>
    %119 = vector.shape_cast %118 : vector<1x1x4x1xf32> to vector<4x1xf32>
    %c1_87 = arith.constant 1 : index
    %c0_88 = arith.constant 0 : index
    %c0_89 = arith.constant 0 : index
    %120 = vector.load %arg2[%c1_87, %c0_88, %c0_89] : memref<9x4x128xf32, #tpu.memory_space<vmem>>, vector<1x4x128xf32>
    %121 = vector.shape_cast %120 : vector<1x4x128xf32> to vector<4x128xf32>
    %122 = vector.broadcast %119 : vector<4x1xf32> to vector<4x128xf32>
    %123 = arith.mulf %122, %121 : vector<4x128xf32>
    %124 = arith.addf %117, %123 : vector<4x128xf32>
    %c2_90 = arith.constant 2 : index
    %c1_91 = arith.constant 1 : index
    %c0_92 = arith.constant 0 : index
    %c0_93 = arith.constant 0 : index
    %125 = vector.load %arg1[%c2_90, %c1_91, %c0_92, %c0_93] : memref<11x2x4x1xf32, #tpu.memory_space<vmem>>, vector<1x1x4x1xf32>
    %126 = vector.shape_cast %125 : vector<1x1x4x1xf32> to vector<4x1xf32>
    %c2_94 = arith.constant 2 : index
    %c0_95 = arith.constant 0 : index
    %c0_96 = arith.constant 0 : index
    %127 = vector.load %arg2[%c2_94, %c0_95, %c0_96] : memref<9x4x128xf32, #tpu.memory_space<vmem>>, vector<1x4x128xf32>
    %128 = vector.shape_cast %127 : vector<1x4x128xf32> to vector<4x128xf32>
    %129 = vector.broadcast %126 : vector<4x1xf32> to vector<4x128xf32>
    %130 = arith.mulf %129, %128 : vector<4x128xf32>
    %131 = arith.addf %124, %130 : vector<4x128xf32>
    %c3_97 = arith.constant 3 : index
    %c1_98 = arith.constant 1 : index
    %c0_99 = arith.constant 0 : index
    %c0_100 = arith.constant 0 : index
    %132 = vector.load %arg1[%c3_97, %c1_98, %c0_99, %c0_100] : memref<11x2x4x1xf32, #tpu.memory_space<vmem>>, vector<1x1x4x1xf32>
    %133 = vector.shape_cast %132 : vector<1x1x4x1xf32> to vector<4x1xf32>
    %c3_101 = arith.constant 3 : index
    %c0_102 = arith.constant 0 : index
    %c0_103 = arith.constant 0 : index
    %134 = vector.load %arg2[%c3_101, %c0_102, %c0_103] : memref<9x4x128xf32, #tpu.memory_space<vmem>>, vector<1x4x128xf32>
    %135 = vector.shape_cast %134 : vector<1x4x128xf32> to vector<4x128xf32>
    %136 = vector.broadcast %133 : vector<4x1xf32> to vector<4x128xf32>
    %137 = arith.mulf %136, %135 : vector<4x128xf32>
    %138 = arith.addf %131, %137 : vector<4x128xf32>
    %c4_104 = arith.constant 4 : index
    %c1_105 = arith.constant 1 : index
    %c0_106 = arith.constant 0 : index
    %c0_107 = arith.constant 0 : index
    %139 = vector.load %arg1[%c4_104, %c1_105, %c0_106, %c0_107] : memref<11x2x4x1xf32, #tpu.memory_space<vmem>>, vector<1x1x4x1xf32>
    %140 = vector.shape_cast %139 : vector<1x1x4x1xf32> to vector<4x1xf32>
    %c4_108 = arith.constant 4 : index
    %c0_109 = arith.constant 0 : index
    %c0_110 = arith.constant 0 : index
    %141 = vector.load %arg2[%c4_108, %c0_109, %c0_110] : memref<9x4x128xf32, #tpu.memory_space<vmem>>, vector<1x4x128xf32>
    %142 = vector.shape_cast %141 : vector<1x4x128xf32> to vector<4x128xf32>
    %143 = vector.broadcast %140 : vector<4x1xf32> to vector<4x128xf32>
    %144 = arith.mulf %143, %142 : vector<4x128xf32>
    %145 = arith.addf %138, %144 : vector<4x128xf32>
    %c5_111 = arith.constant 5 : index
    %c1_112 = arith.constant 1 : index
    %c0_113 = arith.constant 0 : index
    %c0_114 = arith.constant 0 : index
    %146 = vector.load %arg1[%c5_111, %c1_112, %c0_113, %c0_114] : memref<11x2x4x1xf32, #tpu.memory_space<vmem>>, vector<1x1x4x1xf32>
    %147 = vector.shape_cast %146 : vector<1x1x4x1xf32> to vector<4x1xf32>
    %c5_115 = arith.constant 5 : index
    %c0_116 = arith.constant 0 : index
    %c0_117 = arith.constant 0 : index
    %148 = vector.load %arg2[%c5_115, %c0_116, %c0_117] : memref<9x4x128xf32, #tpu.memory_space<vmem>>, vector<1x4x128xf32>
    %149 = vector.shape_cast %148 : vector<1x4x128xf32> to vector<4x128xf32>
    %150 = vector.broadcast %147 : vector<4x1xf32> to vector<4x128xf32>
    %151 = arith.mulf %150, %149 : vector<4x128xf32>
    %152 = arith.addf %145, %151 : vector<4x128xf32>
    %c6_118 = arith.constant 6 : index
    %c1_119 = arith.constant 1 : index
    %c0_120 = arith.constant 0 : index
    %c0_121 = arith.constant 0 : index
    %153 = vector.load %arg1[%c6_118, %c1_119, %c0_120, %c0_121] : memref<11x2x4x1xf32, #tpu.memory_space<vmem>>, vector<1x1x4x1xf32>
    %154 = vector.shape_cast %153 : vector<1x1x4x1xf32> to vector<4x1xf32>
    %c6_122 = arith.constant 6 : index
    %c0_123 = arith.constant 0 : index
    %c0_124 = arith.constant 0 : index
    %155 = vector.load %arg2[%c6_122, %c0_123, %c0_124] : memref<9x4x128xf32, #tpu.memory_space<vmem>>, vector<1x4x128xf32>
    %156 = vector.shape_cast %155 : vector<1x4x128xf32> to vector<4x128xf32>
    %157 = vector.broadcast %154 : vector<4x1xf32> to vector<4x128xf32>
    %158 = arith.mulf %157, %156 : vector<4x128xf32>
    %159 = arith.addf %152, %158 : vector<4x128xf32>
    %c7_125 = arith.constant 7 : index
    %c1_126 = arith.constant 1 : index
    %c0_127 = arith.constant 0 : index
    %c0_128 = arith.constant 0 : index
    %160 = vector.load %arg1[%c7_125, %c1_126, %c0_127, %c0_128] : memref<11x2x4x1xf32, #tpu.memory_space<vmem>>, vector<1x1x4x1xf32>
    %161 = vector.shape_cast %160 : vector<1x1x4x1xf32> to vector<4x1xf32>
    %c7_129 = arith.constant 7 : index
    %c0_130 = arith.constant 0 : index
    %c0_131 = arith.constant 0 : index
    %162 = vector.load %arg2[%c7_129, %c0_130, %c0_131] : memref<9x4x128xf32, #tpu.memory_space<vmem>>, vector<1x4x128xf32>
    %163 = vector.shape_cast %162 : vector<1x4x128xf32> to vector<4x128xf32>
    %164 = vector.broadcast %161 : vector<4x1xf32> to vector<4x128xf32>
    %165 = arith.mulf %164, %163 : vector<4x128xf32>
    %166 = arith.addf %159, %165 : vector<4x128xf32>
    %c8_132 = arith.constant 8 : index
    %c1_133 = arith.constant 1 : index
    %c0_134 = arith.constant 0 : index
    %c0_135 = arith.constant 0 : index
    %167 = vector.load %arg1[%c8_132, %c1_133, %c0_134, %c0_135] : memref<11x2x4x1xf32, #tpu.memory_space<vmem>>, vector<1x1x4x1xf32>
    %168 = vector.shape_cast %167 : vector<1x1x4x1xf32> to vector<4x1xf32>
    %c8_136 = arith.constant 8 : index
    %c0_137 = arith.constant 0 : index
    %c0_138 = arith.constant 0 : index
    %169 = vector.load %arg2[%c8_136, %c0_137, %c0_138] : memref<9x4x128xf32, #tpu.memory_space<vmem>>, vector<1x4x128xf32>
    %170 = vector.shape_cast %169 : vector<1x4x128xf32> to vector<4x128xf32>
    %171 = vector.broadcast %168 : vector<4x1xf32> to vector<4x128xf32>
    %172 = arith.mulf %171, %170 : vector<4x128xf32>
    %173 = arith.addf %166, %172 : vector<4x128xf32>
    %c9_139 = arith.constant 9 : index
    %c1_140 = arith.constant 1 : index
    %c0_141 = arith.constant 0 : index
    %c0_142 = arith.constant 0 : index
    %174 = vector.load %arg1[%c9_139, %c1_140, %c0_141, %c0_142] : memref<11x2x4x1xf32, #tpu.memory_space<vmem>>, vector<1x1x4x1xf32>
    %175 = vector.shape_cast %174 : vector<1x1x4x1xf32> to vector<4x1xf32>
    %176 = vector.broadcast %175 : vector<4x1xf32> to vector<4x128xf32>
    %177 = arith.mulf %173, %176 : vector<4x128xf32>
    %c10_143 = arith.constant 10 : index
    %c1_144 = arith.constant 1 : index
    %c0_145 = arith.constant 0 : index
    %c0_146 = arith.constant 0 : index
    %178 = vector.load %arg1[%c10_143, %c1_144, %c0_145, %c0_146] : memref<11x2x4x1xf32, #tpu.memory_space<vmem>>, vector<1x1x4x1xf32>
    %179 = vector.shape_cast %178 : vector<1x1x4x1xf32> to vector<4x1xf32>
    %180 = vector.broadcast %179 : vector<4x1xf32> to vector<4x128xf32>
    %181 = arith.addf %177, %180 : vector<4x128xf32>
    %cst_147 = arith.constant 5.000000e-01 : f32
    %182 = vector.broadcast %cst_147 : f32 to vector<4x128xf32>
    %183 = arith.mulf %182, %181 : vector<4x128xf32>
    %cst_148 = arith.constant 0.707106769 : f32
    %184 = vector.broadcast %cst_148 : f32 to vector<4x128xf32>
    %185 = arith.mulf %181, %184 : vector<4x128xf32>
    %186 = math.absf %185 : vector<4x128xf32>
    %cst_149 = arith.constant 0.327591091 : f32
    %187 = vector.broadcast %cst_149 : f32 to vector<4x128xf32>
    %188 = arith.mulf %187, %186 : vector<4x128xf32>
    %cst_150 = arith.constant 1.000000e+00 : f32
    %189 = vector.broadcast %cst_150 : f32 to vector<4x128xf32>
    %190 = arith.addf %189, %188 : vector<4x128xf32>
    %191 = tpu.reciprocal %190 : vector<4x128xf32> -> vector<4x128xf32>
    %cst_151 = arith.constant 1.06140542 : f32
    %192 = vector.broadcast %cst_151 : f32 to vector<4x128xf32>
    %193 = arith.mulf %192, %191 : vector<4x128xf32>
    %cst_152 = arith.constant 1.45315206 : f32
    %194 = vector.broadcast %cst_152 : f32 to vector<4x128xf32>
    %195 = arith.subf %193, %194 : vector<4x128xf32>
    %196 = arith.mulf %195, %191 : vector<4x128xf32>
    %cst_153 = arith.constant 1.42141378 : f32
    %197 = vector.broadcast %cst_153 : f32 to vector<4x128xf32>
    %198 = arith.addf %196, %197 : vector<4x128xf32>
    %199 = arith.mulf %198, %191 : vector<4x128xf32>
    %cst_154 = arith.constant 0.284496725 : f32
    %200 = vector.broadcast %cst_154 : f32 to vector<4x128xf32>
    %201 = arith.subf %199, %200 : vector<4x128xf32>
    %202 = arith.mulf %201, %191 : vector<4x128xf32>
    %cst_155 = arith.constant 0.254829586 : f32
    %203 = vector.broadcast %cst_155 : f32 to vector<4x128xf32>
    %204 = arith.addf %202, %203 : vector<4x128xf32>
    %205 = arith.mulf %204, %191 : vector<4x128xf32>
    %cst_156 = arith.constant 0.000000e+00 : f32
    %206 = vector.broadcast %cst_156 : f32 to vector<4x128xf32>
    %207 = arith.subf %206, %186 : vector<4x128xf32>
    %208 = arith.mulf %207, %186 : vector<4x128xf32>
    %209 = math.exp %208 : vector<4x128xf32>
    %210 = arith.mulf %205, %209 : vector<4x128xf32>
    %cst_157 = arith.constant 1.000000e+00 : f32
    %211 = vector.broadcast %cst_157 : f32 to vector<4x128xf32>
    %212 = arith.subf %211, %210 : vector<4x128xf32>
    %cst_158 = arith.constant 0.000000e+00 : f32
    %213 = vector.broadcast %cst_158 : f32 to vector<4x128xf32>
    %214 = arith.cmpf oge, %185, %213 : vector<4x128xf32>
    %cst_159 = arith.constant 0.000000e+00 : f32
    %215 = vector.broadcast %cst_159 : f32 to vector<4x128xf32>
    %216 = arith.subf %215, %212 : vector<4x128xf32>
    %217 = arith.select %214, %212, %216 : vector<4x128xi1>, vector<4x128xf32>
    %cst_160 = arith.constant 1.000000e+00 : f32
    %218 = vector.broadcast %cst_160 : f32 to vector<4x128xf32>
    %219 = arith.addf %218, %217 : vector<4x128xf32>
    %220 = arith.mulf %183, %219 : vector<4x128xf32>
    %c1_161 = arith.constant 1 : index
    %c0_162 = arith.constant 0 : index
    %c0_163 = arith.constant 0 : index
    %221 = vector.load %arg3[%c1_161, %c0_162, %c0_163] : memref<2x4x128xf32, #tpu.memory_space<vmem>>, vector<1x4x128xf32>
    %222 = vector.shape_cast %221 : vector<1x4x128xf32> to vector<4x128xf32>
    %223 = vector.shape_cast %220 : vector<4x128xf32> to vector<1x4x128xf32>
    tpu.vector_store %arg3[%c1_161, %c0_162, %c0_163], %223 {strides = array<i32>} : memref<2x4x128xf32, #tpu.memory_space<vmem>>, vector<1x4x128xf32>,
    return
  }
  func.func @transform_0(%arg0: i32) -> (i32, i32, i32, i32) {
    %c0_i32 = arith.constant 0 : i32
    %c0_i32_0 = arith.constant 0 : i32
    %c0_i32_1 = arith.constant 0 : i32
    %c0_i32_2 = arith.constant 0 : i32
    %c0_i32_3 = arith.constant 0 : i32
    return %c0_i32, %c0_i32_0, %c0_i32_1, %c0_i32_2 : i32, i32, i32, i32
  }
  func.func @transform_1(%arg0: i32) -> (i32, i32, i32) {
    %c0_i32 = arith.constant 0 : i32
    %c0_i32_0 = arith.constant 0 : i32
    %c0_i32_1 = arith.constant 0 : i32
    return %c0_i32, %c0_i32_0, %arg0 : i32, i32, i32
  }
  func.func @transform_2(%arg0: i32) -> (i32, i32, i32) {
    %c0_i32 = arith.constant 0 : i32
    %c0_i32_0 = arith.constant 0 : i32
    %c0_i32_1 = arith.constant 0 : i32
    return %c0_i32, %c0_i32_0, %arg0 : i32, i32, i32
  }
}

</mosaic_0001>

<llo_original>
// kernel: tpu_custom_call.1
$region0: #{tpu_custom_call.1}
  #allocation0 [shape = 'u32[]', space=smem, size = 0x4, offset = 0x4, fixed_abs, tag = 'smem constant byte address 0x4 - core index']
  #allocation1 [shape = 'u32[144,128]{1,0:T(1,128)}', space=vmem, size = 0x12000, scoped, tag = 'internal scratch']
  %s0 = inlined_call_operand.vmem [shape: f32[11,2,4,1], index: 0, kind: input, shape index: {}]
  %s1 = inlined_call_operand.vmem [shape: f32[9,4,128], index: 1, kind: input, shape index: {}]
  %s2 = inlined_call_operand.hbm [shape: f32[2,4,128], index: 2, kind: output, shape index: {}]
  %s3 = sld [smem:[#allocation0]]
  $region18: #{tpu_custom_call.1} parent=0
    _
  %s5 = ssub.s32 1, %s3
  %s6 = scalar_select 0, %s5, %s3
  $region1: #{tpu_custom_call.1} parent=0
    #allocation2 [shape = 'u8[4096]{0}', space=vmem, size = 0x1000, scoped, tag = 'output window, operand 0, single buffered']
    #allocation3 [shape = 's32[1]{0}', space=sflag, size = 0x4, scoped, tag = 'scoped memory for tpu_custom_call.1']
    %7 = vsyncpa [#allocation3], 0
    // Predicated region
    $region2: #{tpu_custom_call.1} parent=1 // pred_check
      _
    $region3: #{tpu_custom_call.1} parent=1 // pred_check_branch
      %9 = sbr.rel (0) target = $region5
    $region4: #{tpu_custom_call.1} parent=1 // pred_region
      _
    $region5: #{tpu_custom_call.1} parent=1 // pred_fallthru
      _
    // Predicated region
    $region6: #{tpu_custom_call.1} parent=1 // pred_check
      _
    $region7: #{tpu_custom_call.1} parent=1 // pred_check_branch
      %11 = sbr.rel (0) target = $region9
    $region8: #{tpu_custom_call.1} parent=1 // pred_region
      _
    $region9: #{tpu_custom_call.1} parent=1 // pred_fallthru
      _
    %v12 = vld [vmem:[%s0] sm:$0xf]
    %v13 = vld [vmem:[%s1] sm:$0xf]
    %15 = vset.pattern.permute.xlu0 0
    %16 = vperm.xlu0 %15, %v12
    %v17 = vpop.permute.xlu0 %16
    %v19 = vmul.f32 %v17, %v13
    %s20 = scalar_lea.vmem %s0, 8
    %v21 = vld [vmem:[%s20] sm:$0xf]
    %s22 = scalar_lea.vmem %s1, 4
    %v23 = vld [vmem:[%s22] sm:$0xf]
    %25 = vset.pattern.permute.xlu0 0
    %26 = vperm.xlu0 %25, %v21
    %v27 = vpop.permute.xlu0 %26
    %v29 = vmul.f32 %v27, %v23
    %v30 = vadd.f32 %v19, %v29
    %s31 = scalar_lea.vmem %s0, 16
    %v32 = vld [vmem:[%s31] sm:$0xf]
    %s33 = scalar_lea.vmem %s1, 8
    %v34 = vld [vmem:[%s33] sm:$0xf]
    %36 = vset.pattern.permute.xlu0 0
    %37 = vperm.xlu0 %36, %v32
    %v38 = vpop.permute.xlu0 %37
    %v40 = vmul.f32 %v38, %v34
    %v41 = vadd.f32 %v30, %v40
    %s42 = scalar_lea.vmem %s0, 24
    %v43 = vld [vmem:[%s42] sm:$0xf]
    %s44 = scalar_lea.vmem %s1, 12
    %v45 = vld [vmem:[%s44] sm:$0xf]
    %47 = vset.pattern.permute.xlu0 0
    %48 = vperm.xlu0 %47, %v43
    %v49 = vpop.permute.xlu0 %48
    %v51 = vmul.f32 %v49, %v45
    %v52 = vadd.f32 %v41, %v51
    %s53 = scalar_lea.vmem %s0, 32
    %v54 = vld [vmem:[%s53] sm:$0xf]
    %s55 = scalar_lea.vmem %s1, 16
    %v56 = vld [vmem:[%s55] sm:$0xf]
    %58 = vset.pattern.permute.xlu0 0
    %59 = vperm.xlu0 %58, %v54
    %v60 = vpop.permute.xlu0 %59
    %v62 = vmul.f32 %v60, %v56
    %v63 = vadd.f32 %v52, %v62
    %s64 = scalar_lea.vmem %s0, 40
    %v65 = vld [vmem:[%s64] sm:$0xf]
    %s66 = scalar_lea.vmem %s1, 20
    %v67 = vld [vmem:[%s66] sm:$0xf]
    %69 = vset.pattern.permute.xlu0 0
    %70 = vperm.xlu0 %69, %v65
    %v71 = vpop.permute.xlu0 %70
    %v73 = vmul.f32 %v71, %v67
    %v74 = vadd.f32 %v63, %v73
    %s75 = scalar_lea.vmem %s0, 48
    %v76 = vld [vmem:[%s75] sm:$0xf]
    %s77 = scalar_lea.vmem %s1, 24
    %v78 = vld [vmem:[%s77] sm:$0xf]
    %80 = vset.pattern.permute.xlu0 0
    %81 = vperm.xlu0 %80, %v76
    %v82 = vpop.permute.xlu0 %81
    %v84 = vmul.f32 %v82, %v78
    %v85 = vadd.f32 %v74, %v84
    %s86 = scalar_lea.vmem %s0, 56
    %v87 = vld [vmem:[%s86] sm:$0xf]
    %s88 = scalar_lea.vmem %s1, 28
    %v89 = vld [vmem:[%s88] sm:$0xf]
    %91 = vset.pattern.permute.xlu0 0
    %92 = vperm.xlu0 %91, %v87
    %v93 = vpop.permute.xlu0 %92
    %v95 = vmul.f32 %v93, %v89
    %v96 = vadd.f32 %v85, %v95
    %s97 = scalar_lea.vmem %s0, 64
    %v98 = vld [vmem:[%s97] sm:$0xf]
    %s99 = scalar_lea.vmem %s1, 32
    %v100 = vld [vmem:[%s99] sm:$0xf]
    %102 = vset.pattern.permute.xlu0 0
    %103 = vperm.xlu0 %102, %v98
    %v104 = vpop.permute.xlu0 %103
    %v106 = vmul.f32 %v104, %v100
    %v107 = vadd.f32 %v96, %v106
    %s108 = scalar_lea.vmem %s0, 72
    %v109 = vld [vmem:[%s108] sm:$0xf]
    %111 = vset.pattern.permute.xlu0 0
    %112 = vperm.xlu0 %111, %v109
    %v113 = vpop.permute.xlu0 %112
    %v115 = vmul.f32 %v107, %v113
    %s116 = scalar_lea.vmem %s0, 80
    %v117 = vld [vmem:[%s116] sm:$0xf]
    %119 = vset.pattern.permute.xlu0 0
    %120 = vperm.xlu0 %119, %v117
    %v121 = vpop.permute.xlu0 %120
    %v123 = vadd.f32 %v115, %v121
    %v124 = vmul.f32 %v123, 0.5
    %v125 = vmul.f32 %v123, 0.70710677
    %v126 = vand.u32 2147483647, %v125
    %v127 = vmul.f32 %v126, 0.3275911
    %v128 = vadd.f32 %v127, 1.0
    %v129 = vrcp.pop %v128
    %v130 = vmul.f32 %v129, 1.0614054
    %v131 = vsub.f32 %v130, 1.4531521
    %v132 = vmul.f32 %v131, %v129
    %v133 = vadd.f32 %v132, 1.4214138
    %v134 = vmul.f32 %v133, %v129
    %v135 = vsub.f32 %v134, 0.28449672
    %v136 = vmul.f32 %v135, %v129
    %v137 = vadd.f32 %v136, 0.2548296
    %v138 = vmul.f32 %v137, %v129
    %v139 = vsub.f32 0.0, %v126
    %v140 = vmul.f32 %v139, %v126
    %v141 = vmul.f32 %v140, 1.442695
    %v142 = vpow.pop %v141
    %v143 = vmul.f32 %v138, %v142
    %v144 = vsub.f32 1.0, %v143
    %vm145 = vcmp.ge.f32.partialorder %v125, 0.0
    %v146 = vsub.f32 0.0, %v144
    %v147 = vsel %vm145, %v144, %v146
    %v148 = vadd.f32 %v147, 1.0
    %v149 = vmul.f32 %v124, %v148
    %150 = vst [vmem:[#allocation2] sm:$0xf] %v149
    %s151 = scalar_lea.vmem %s0, 4
    %v152 = vld [vmem:[%s151] sm:$0xf]
    %v153 = vld [vmem:[%s1] sm:$0xf]
    %155 = vset.pattern.permute.xlu0 0
    %156 = vperm.xlu0 %155, %v152
    %v157 = vpop.permute.xlu0 %156
    %v159 = vmul.f32 %v157, %v153
    %s160 = scalar_lea.vmem %s0, 12
    %v161 = vld [vmem:[%s160] sm:$0xf]
    %v162 = vld [vmem:[%s22] sm:$0xf]
    %164 = vset.pattern.permute.xlu0 0
    %165 = vperm.xlu0 %164, %v161
    %v166 = vpop.permute.xlu0 %165
    %v168 = vmul.f32 %v166, %v162
    %v169 = vadd.f32 %v159, %v168
    %s170 = scalar_lea.vmem %s0, 20
    %v171 = vld [vmem:[%s170] sm:$0xf]
    %v172 = vld [vmem:[%s33] sm:$0xf]
    %174 = vset.pattern.permute.xlu0 0
    %175 = vperm.xlu0 %174, %v171
    %v176 = vpop.permute.xlu0 %175
    %v178 = vmul.f32 %v176, %v172
    %v179 = vadd.f32 %v169, %v178
    %s180 = scalar_lea.vmem %s0, 28
    %v181 = vld [vmem:[%s180] sm:$0xf]
    %v182 = vld [vmem:[%s44] sm:$0xf]
    %184 = vset.pattern.permute.xlu0 0
    %185 = vperm.xlu0 %184, %v181
    %v186 = vpop.permute.xlu0 %185
    %v188 = vmul.f32 %v186, %v182
    %v189 = vadd.f32 %v179, %v188
    %s190 = scalar_lea.vmem %s0, 36
    %v191 = vld [vmem:[%s190] sm:$0xf]
    %v192 = vld [vmem:[%s55] sm:$0xf]
    %194 = vset.pattern.permute.xlu0 0
    %195 = vperm.xlu0 %194, %v191
    %v196 = vpop.permute.xlu0 %195
    %v198 = vmul.f32 %v196, %v192
    %v199 = vadd.f32 %v189, %v198
    %s200 = scalar_lea.vmem %s0, 44
    %v201 = vld [vmem:[%s200] sm:$0xf]
    %v202 = vld [vmem:[%s66] sm:$0xf]
    %204 = vset.pattern.permute.xlu0 0
    %205 = vperm.xlu0 %204, %v201
    %v206 = vpop.permute.xlu0 %205
    %v208 = vmul.f32 %v206, %v202
    %v209 = vadd.f32 %v199, %v208
    %s210 = scalar_lea.vmem %s0, 52
    %v211 = vld [vmem:[%s210] sm:$0xf]
    %v212 = vld [vmem:[%s77] sm:$0xf]
    %214 = vset.pattern.permute.xlu0 0
    %215 = vperm.xlu0 %214, %v211
    %v216 = vpop.permute.xlu0 %215
    %v218 = vmul.f32 %v216, %v212
    %v219 = vadd.f32 %v209, %v218
    %s220 = scalar_lea.vmem %s0, 60
    %v221 = vld [vmem:[%s220] sm:$0xf]
    %v222 = vld [vmem:[%s88] sm:$0xf]
    %224 = vset.pattern.permute.xlu0 0
    %225 = vperm.xlu0 %224, %v221
    %v226 = vpop.permute.xlu0 %225
    %v228 = vmul.f32 %v226, %v222
    %v229 = vadd.f32 %v219, %v228
    %s230 = scalar_lea.vmem %s0, 68
    %v231 = vld [vmem:[%s230] sm:$0xf]
    %v232 = vld [vmem:[%s99] sm:$0xf]
    %234 = vset.pattern.permute.xlu0 0
    %235 = vperm.xlu0 %234, %v231
    %v236 = vpop.permute.xlu0 %235
    %v238 = vmul.f32 %v236, %v232
    %v239 = vadd.f32 %v229, %v238
    %s240 = scalar_lea.vmem %s0, 76
    %v241 = vld [vmem:[%s240] sm:$0xf]
    %243 = vset.pattern.permute.xlu0 0
    %244 = vperm.xlu0 %243, %v241
    %v245 = vpop.permute.xlu0 %244
    %v247 = vmul.f32 %v239, %v245
    %s248 = scalar_lea.vmem %s0, 84
    %v249 = vld [vmem:[%s248] sm:$0xf]
    %251 = vset.pattern.permute.xlu0 0
    %252 = vperm.xlu0 %251, %v249
    %v253 = vpop.permute.xlu0 %252
    %v255 = vadd.f32 %v247, %v253
    %v256 = vmul.f32 %v255, 0.5
    %v257 = vmul.f32 %v255, 0.70710677
    %v258 = vand.u32 2147483647, %v257
    %v259 = vmul.f32 %v258, 0.3275911
    %v260 = vadd.f32 %v259, 1.0
    %v261 = vrcp.pop %v260
    %v262 = vmul.f32 %v261, 1.0614054
    %v263 = vsub.f32 %v262, 1.4531521
    %v264 = vmul.f32 %v263, %v261
    %v265 = vadd.f32 %v264, 1.4214138
    %v266 = vmul.f32 %v265, %v261
    %v267 = vsub.f32 %v266, 0.28449672
    %v268 = vmul.f32 %v267, %v261
    %v269 = vadd.f32 %v268, 0.2548296
    %v270 = vmul.f32 %v269, %v261
    %v271 = vsub.f32 0.0, %v258
    %v272 = vmul.f32 %v271, %v258
    %v273 = vmul.f32 %v272, 1.442695
    %v274 = vpow.pop %v273
    %v275 = vmul.f32 %v270, %v274
    %v276 = vsub.f32 1.0, %v275
    %vm277 = vcmp.ge.f32.partialorder %v257, 0.0
    %v278 = vsub.f32 0.0, %v276
    %v279 = vsel %vm277, %v276, %v278
    %v280 = vadd.f32 %v279, 1.0
    %v281 = vmul.f32 %v256, %v280
    %s282 = scalar_lea.vmem [#allocation2], 4
    %283 = vst [vmem:[%s282] sm:$0xf] %v281
    // Predicated region
    $region10: #{tpu_custom_call.1} parent=1 // pred_check
      _
    $region11: #{tpu_custom_call.1} parent=1 // pred_check_branch
      %285 = sbr.rel (0) target = $region13
    $region12: #{tpu_custom_call.1} parent=1 // pred_region
      %s287 = ssub.s32 128, 128
      %288 = vsyncadd [#allocation3], %s287
      %s289 = sshll.u32 [#allocation2], 4
      %s290 = int_to_ptr.vmem [resolvable:$true] %s289
      %295 = dma.vmem_to_hbm [thread:$0]  %s290, 128, %s2, [#allocation3], 64, 64, 4
    $region13: #{tpu_custom_call.1} parent=1 // pred_fallthru
      _
    // Predicated region
    $region14: #{tpu_custom_call.1} parent=1 // pred_check
      _
    $region15: #{tpu_custom_call.1} parent=1 // pred_check_branch
      %297 = sbr.rel (0) target = $region17
    $region16: #{tpu_custom_call.1} parent=1 // pred_region
      %298 = dma.done [#allocation3], 128
    $region17: #{tpu_custom_call.1} parent=1 // pred_fallthru
      _
    %299 = vsyncpa [#allocation3], 1

</llo_original>
